<compile_context>
chip_gen: v6e
topology: v6e:2x2x1
jax: 0.10.0
libtpu: 0.0.40
codegen_flags: <defaults>
</compile_context>

<pallas_src>
import jax
import jax.numpy as jnp
from jax.experimental import pallas as pl
from jax.experimental.pallas import tpu as pltpu

C_IN = 13
C_OUT = 25
TS_MAX = 32768  # lanes per spatial tile; 2-buffered IO ~12.6 MB -> fits all gens


def _deconv1x1_silu_kernel(x_ref, wt_ref, b_ref, o_ref):
    # x_ref:  (C_IN, TS)    f32  — channels on sublanes, spatial on lanes
    # wt_ref: (C_OUT, C_IN) bf16 — resident (constant index_map)
    # b_ref:  (C_OUT, 1)    f32  — resident (constant index_map)
    # o_ref:  (C_OUT, TS)   f32  — lane-dense store (TS is a 128-multiple)
    x_bf = x_ref[...].astype(jnp.bfloat16)
    v1 = jnp.dot(wt_ref[...], x_bf, preferred_element_type=jnp.float32)
    v1 = v1 + b_ref[...]  # broadcast bias over lanes
    # SiLU: v1 * sigmoid(v1) = v1 / (1 + exp(-v1)); exp + approx recip go to EUP.
    o_ref[...] = (v1 * pl.reciprocal(1.0 + jnp.exp(-v1), approx=True)).astype(
        o_ref.dtype
    )


def _round_up(x: int, m: int) -> int:
    return (x + m - 1) // m * m


def _spatial_tile(hw: int, n: int) -> int:
    """128-aligned spatial tile, scaled with hw, megacore-aware."""
    if hw <= 128:
        return hw  # single tile equal to full spatial extent (no alignment needed)
    ts = min(TS_MAX, _round_up(hw, 128))
    # v7x has 2 TensorCores: avoid a 1-step "parallel" grid on medium inputs.
    if n * pl.cdiv(hw, ts) < 2:
        ts = max(128, _round_up(pl.cdiv(hw, 2), 128))
    return ts


def deconv1x1_silu(x_nchw, weight, bias):
    """ConvTranspose2d(13, 25, 1, stride=1, padding=0) + SiLU, fused.

    x_nchw: (N, 13, H, W) f32
    weight: (13, 25)  (ConvTranspose2d weight (in, out, 1, 1) squeezed)
    bias:   (25,)
    Returns (N, 25, H, W) f32.
    """
    n, c_in, h, w = x_nchw.shape
    assert c_in == C_IN

    hw = h * w
    ts = _spatial_tile(hw, n)
    n_tiles = pl.cdiv(hw, ts)

    # Free reshape, no transpose, no pad (ragged last tile handled by masking).
    x_flat = x_nchw.reshape(n, c_in, hw)
    wt = weight.T.astype(jnp.bfloat16)          # (C_OUT, C_IN), single-pass MXU
    bias2d = bias.reshape(C_OUT, 1).astype(jnp.float32)

    out_flat = pl.pallas_call(
        _deconv1x1_silu_kernel,
        out_shape=jax.ShapeDtypeStruct((n, C_OUT, hw), jnp.float32),
        grid_spec=pltpu.PrefetchScalarGridSpec(
            num_scalar_prefetch=0,
            grid=(n, n_tiles),
            in_specs=[
                # Per-sample, per-spatial-tile block of the input.
                pl.BlockSpec((pl.Squeezed(), C_IN, ts), lambda b, s: (b, 0, s)),
                # Weight / bias: constant block index -> stay resident in VMEM.
                pl.BlockSpec((C_OUT, C_IN), lambda b, s: (0, 0)),
                pl.BlockSpec((C_OUT, 1), lambda b, s: (0, 0)),
            ],
            out_specs=pl.BlockSpec(
                (pl.Squeezed(), C_OUT, ts), lambda b, s: (b, 0, s)
            ),
        ),
        compiler_params=pltpu.CompilerParams(
            # Both axes independent -> megacore sharding on v7x.
            dimension_semantics=("parallel", "parallel"),
            # Large tiles: raise scoped VMEM above v5e's 16 MiB / v6e-v7x's
            # 32 MiB defaults; 48 MiB leaves headroom under v7x's 64 MiB.
            vmem_limit_bytes=48 * 1024 * 1024,
        ),
    )(x_flat, wt, bias2d)

    # No padding was added, so no slice: straight reshape back to NCHW.
    return out_flat.reshape(n, C_OUT, h, w)


def _reference(x_nchw, weight, bias):
    v1 = jnp.einsum("nchw,co->nohw", x_nchw, weight) + bias[None, :, None, None]
    return v1 * jax.nn.sigmoid(v1)


if __name__ == "__main__":
    key = jax.random.PRNGKey(0)
    kx, kw, kb, kx2 = jax.random.split(key, 4)

    # Deterministic parameters (ConvTranspose2d weight (13, 25, 1, 1) squeezed).
    bound = 1.0 / (C_IN ** 0.5)
    weight = jax.random.uniform(kw, (C_IN, C_OUT), jnp.float32, -bound, bound)
    bias = jax.random.uniform(kb, (C_OUT,), jnp.float32, -bound, bound)

    # Aligned path: batch=2, spatial 16x16 (hw=256, one 128-aligned tile/step).
    x = jax.random.normal(kx, (2, C_IN, 16, 16), dtype=jnp.float32)
    out = jax.block_until_ready(deconv1x1_silu(x, weight, bias))
    ref = _reference(x, weight, bias)
    assert out.shape == (2, C_OUT, 16, 16)
    assert jnp.allclose(out, ref, atol=3e-2, rtol=3e-2)  # bf16 MXU + approx recip

    # Ragged + megacore-split path: hw=504 (not a 128-multiple) -> 2 spatial
    # tiles, masked stores on the partial last tile.
    x2 = jax.random.normal(kx2, (1, C_IN, 24, 21), dtype=jnp.float32)
    out2 = jax.block_until_ready(deconv1x1_silu(x2, weight, bias))
    ref2 = _reference(x2, weight, bias)
    assert out2.shape == (1, C_OUT, 24, 21)
    assert jnp.allclose(out2, ref2, atol=3e-2, rtol=3e-2)

    print("KERNEL_OK")
</pallas_src>

<mosaic_0001>
module attributes {stable_mosaic.version = 11 : i64} {
  func.func @_deconv1x1_silu_kernel(%arg0: i32, %arg1: i32, %arg2: memref<1x13x256xf32, #tpu.memory_space<vmem>>, %arg3: memref<25x13xbf16, #tpu.memory_space<vmem>>, %arg4: memref<25x1xf32, #tpu.memory_space<vmem>>, %arg5: memref<1x25x256xf32, #tpu.memory_space<vmem>>) attributes {dimension_semantics = [#tpu.dimension_semantics<parallel>, #tpu.dimension_semantics<parallel>], iteration_bounds = array<i64: 2, 1>, scalar_prefetch = 0 : i64, scratch_operands = 0 : i64, tpu.core_type = #tpu.core_type<tc>, window_params = [{transform_indices = @transform_0, window_bounds = array<i64: 1, 13, 256>}, {pipeline_mode = #tpu.pipeline_mode<synchronous>, transform_indices = @transform_1, window_bounds = array<i64: 25, 13>}, {pipeline_mode = #tpu.pipeline_mode<synchronous>, transform_indices = @transform_2, window_bounds = array<i64: 25, 1>}, {transform_indices = @transform_3, window_bounds = array<i64: 1, 25, 256>}]} {
    %c0 = arith.constant 0 : index
    %c0_0 = arith.constant 0 : index
    %c0_1 = arith.constant 0 : index
    %0 = vector.load %arg2[%c0, %c0_0, %c0_1] : memref<1x13x256xf32, #tpu.memory_space<vmem>>, vector<1x13x256xf32>
    %1 = vector.shape_cast %0 : vector<1x13x256xf32> to vector<13x256xf32>
    %2 = arith.truncf %1 : vector<13x256xf32> to vector<13x256xbf16>
    %c0_2 = arith.constant 0 : index
    %c0_3 = arith.constant 0 : index
    %3 = vector.load %arg3[%c0_2, %c0_3] : memref<25x13xbf16, #tpu.memory_space<vmem>>, vector<25x13xbf16>
    %cst = arith.constant dense<0.000000e+00> : vector<25x256xf32>
    %4 = tpu.matmul %3, %2, %cst {dimension_numbers = #tpu.dot_dimension_numbers<[1], [0], [0], [1], [0, 0, 1, 1], [], []>} : vector<25x13xbf16>, vector<13x256xbf16>, vector<25x256xf32> -> vector<25x256xf32>
    %c0_4 = arith.constant 0 : index
    %c0_5 = arith.constant 0 : index
    %5 = vector.load %arg4[%c0_4, %c0_5] : memref<25x1xf32, #tpu.memory_space<vmem>>, vector<25x1xf32>
    %6 = vector.broadcast %5 : vector<25x1xf32> to vector<25x256xf32>
    %7 = arith.addf %4, %6 : vector<25x256xf32>
    %cst_6 = arith.constant 0.000000e+00 : f32
    %8 = vector.broadcast %cst_6 : f32 to vector<25x256xf32>
    %9 = arith.subf %8, %7 : vector<25x256xf32>
    %10 = math.exp %9 : vector<25x256xf32>
    %cst_7 = arith.constant 1.000000e+00 : f32
    %11 = vector.broadcast %cst_7 : f32 to vector<25x256xf32>
    %12 = arith.addf %11, %10 : vector<25x256xf32>
    %13 = tpu.reciprocal %12 {approx = true} : vector<25x256xf32> -> vector<25x256xf32>
    %14 = arith.mulf %7, %13 : vector<25x256xf32>
    %c0_8 = arith.constant 0 : index
    %c0_9 = arith.constant 0 : index
    %c0_10 = arith.constant 0 : index
    %15 = vector.load %arg5[%c0_8, %c0_9, %c0_10] : memref<1x25x256xf32, #tpu.memory_space<vmem>>, vector<1x25x256xf32>
    %16 = vector.shape_cast %15 : vector<1x25x256xf32> to vector<25x256xf32>
    %17 = vector.shape_cast %14 : vector<25x256xf32> to vector<1x25x256xf32>
    tpu.vector_store %arg5[%c0_8, %c0_9, %c0_10], %17 {strides = array<i32>} : memref<1x25x256xf32, #tpu.memory_space<vmem>>, vector<1x25x256xf32>,
    return
  }
  func.func @transform_0(%arg0: i32, %arg1: i32) -> (i32, i32, i32) {
    %c0_i32 = arith.constant 0 : i32
    %c0_i32_0 = arith.constant 0 : i32
    return %arg0, %c0_i32, %arg1 : i32, i32, i32
  }
  func.func @transform_1(%arg0: i32, %arg1: i32) -> (i32, i32) {
    %c0_i32 = arith.constant 0 : i32
    %c0_i32_0 = arith.constant 0 : i32
    %c0_i32_1 = arith.constant 0 : i32
    return %c0_i32, %c0_i32_0 : i32, i32
  }
  func.func @transform_2(%arg0: i32, %arg1: i32) -> (i32, i32) {
    %c0_i32 = arith.constant 0 : i32
    %c0_i32_0 = arith.constant 0 : i32
    %c0_i32_1 = arith.constant 0 : i32
    return %c0_i32, %c0_i32_0 : i32, i32
  }
  func.func @transform_3(%arg0: i32, %arg1: i32) -> (i32, i32, i32) {
    %c0_i32 = arith.constant 0 : i32
    %c0_i32_0 = arith.constant 0 : i32
    return %arg0, %c0_i32, %arg1 : i32, i32, i32
  }
}

</mosaic_0001>

<llo_original>
// kernel: tpu_custom_call.1
$region0: #{tpu_custom_call.1}
  #allocation0 [shape = 'u32[]', space=smem, size = 0x4, offset = 0x4, fixed_abs, tag = 'smem constant byte address 0x4 - core index']
  #allocation1 [shape = 'u32[144,128]{1,0:T(1,128)}', space=vmem, size = 0x12000, scoped, tag = 'internal scratch']
  %s0 = inlined_call_operand.vmem [shape: f32[2,13,256], index: 0, kind: input, shape index: {}]
  %s1 = inlined_call_operand.vmem [shape: bf16[25,13], index: 1, kind: input, shape index: {}]
  %s2 = inlined_call_operand.vmem [shape: f32[25,1], index: 2, kind: input, shape index: {}]
  %s3 = inlined_call_operand.vmem [shape: f32[2,25,256], index: 3, kind: output, shape index: {}]
  %s4 = sld [smem:[#allocation0]]
  $region45: #{tpu_custom_call.1} parent=0
    _
  %s6 = ssub.s32 1, %s4
  %s7 = scalar_select 0, %s6, %s4
  loop: start=0, step=1, limit=4
  $region2: #{tpu_custom_call.1} parent=0 // loop_pre_header
    _
  $region3: #{tpu_custom_call.1} parent=0 // loop_header
    %s9 = sphi 0, %s13
    %p10 = scmp.ge.s32.totalorder %s9, 4
    %s16 = sphi 0, %s28
    %s17 = sphi 0, %s24
    %s18 = sphi 0, %s16
    %s19 = sphi 0, %s17
    %s20 = sphi 0, %s18
    %s21 = sphi 0, %s19
    %s33 = sphi 0, %s35
    %s36 = sphi 0, %s33
    %s37 = sphi 0, %s36
    %s53 = sphi 0, %s37
    %s57 = sphi 0, %s57
    %s59 = sphi 0, %s57
    %s60 = sphi 0, %s59
    %s74 = sphi 0, %s60
    %s78 = sphi 0, %s78
    %s80 = sphi 0, %s78
    %s81 = sphi 0, %s80
    %s95 = sphi 0, %s81
    %s103 = sphi 0, %s105
    %s106 = sphi 0, %s103
    %s107 = sphi 0, %s106
    %s123 = sphi 0, %s107
  $region4: #{tpu_custom_call.1} parent=0 // loop_header_branch
    %12 = sbr.rel (%p10) target = $region8
  $region5: #{tpu_custom_call.1} parent=0 // loop_body
    %s14 = ssub.s32 %s9, 1
    %s15 = ssub.s32 %s9, 2
    %s22 = sadd.s32 1, %s17
    %p23 = scmp.ge.s32.totalorder %s22, 1
    %s24 = scalar_select %p23, 0, %s22
    %s25 = sadd.s32 1, %s16
    %s26 = scalar_select %p23, %s25, %s16
    %p27 = scmp.ge.s32.totalorder %s26, 2
    %s28 = scalar_select %p27, 0, %s26
    %s29 = ssub.s32 %s16, %s28
    %s30 = ssub.s32 %s17, %s24
    %s31 = sor.u32 %s29, %s30
    %p32 = scmp.eq.s32.totalorder %s31, 0
    %s34 = sadd.s32 %s33, 1
    %s35 = scalar_select %p32, %s33, %s34
    %p38 = pneg %p32
    %p39 = scmp.eq.s32.totalorder %s9, 1
    %p40 = por %p38, %p39
    %p41 = scmp.ne.s32.totalorder %s33, %s36
    %p42 = scmp.eq.s32.totalorder %s9, 0
    %p43 = por %p41, %p42
    %p44 = scmp.ne.s32.totalorder %s33, %s36
    %p45 = scmp.eq.s32.totalorder %s14, 1
    %p46 = por %p44, %p45
    %p47 = scmp.ne.s32.totalorder %s36, %s37
    %p48 = scmp.eq.s32.totalorder %s14, 0
    %p49 = por %p47, %p48
    %p50 = scmp.ne.s32.totalorder %s36, %s37
    %p51 = scmp.eq.s32.totalorder %s15, 1
    %p52 = por %p50, %p51
    %p54 = scmp.ne.s32.totalorder %s37, %s53
    %p55 = scmp.eq.s32.totalorder %s15, 0
    %p56 = por %p54, %p55
    %s58 = sadd.s32 %s57, 1
    %p61 = scmp.eq.s32.totalorder %s9, 1
    %p62 = scmp.ne.s32.totalorder %s57, %s59
    %p63 = scmp.eq.s32.totalorder %s9, 0
    %p64 = por %p62, %p63
    %p65 = scmp.ne.s32.totalorder %s57, %s59
    %p66 = scmp.eq.s32.totalorder %s14, 1
    %p67 = por %p65, %p66
    %p68 = scmp.ne.s32.totalorder %s59, %s60
    %p69 = scmp.eq.s32.totalorder %s14, 0
    %p70 = por %p68, %p69
    %p71 = scmp.ne.s32.totalorder %s59, %s60
    %p72 = scmp.eq.s32.totalorder %s15, 1
    %p73 = por %p71, %p72
    %p75 = scmp.ne.s32.totalorder %s60, %s74
    %p76 = scmp.eq.s32.totalorder %s15, 0
    %p77 = por %p75, %p76
    %s79 = sadd.s32 %s78, 1
    %p82 = scmp.eq.s32.totalorder %s9, 1
    %p83 = scmp.ne.s32.totalorder %s78, %s80
    %p84 = scmp.eq.s32.totalorder %s9, 0
    %p85 = por %p83, %p84
    %p86 = scmp.ne.s32.totalorder %s78, %s80
    %p87 = scmp.eq.s32.totalorder %s14, 1
    %p88 = por %p86, %p87
    %p89 = scmp.ne.s32.totalorder %s80, %s81
    %p90 = scmp.eq.s32.totalorder %s14, 0
    %p91 = por %p89, %p90
    %p92 = scmp.ne.s32.totalorder %s80, %s81
    %p93 = scmp.eq.s32.totalorder %s15, 1
    %p94 = por %p92, %p93
    %p96 = scmp.ne.s32.totalorder %s81, %s95
    %p97 = scmp.eq.s32.totalorder %s15, 0
    %p98 = por %p96, %p97
    %s99 = ssub.s32 %s16, %s28
    %s100 = ssub.s32 %s17, %s24
    %s101 = sor.u32 %s99, %s100
    %p102 = scmp.eq.s32.totalorder %s101, 0
    %s104 = sadd.s32 %s103, 1
    %s105 = scalar_select %p102, %s103, %s104
    %p108 = pneg %p102
    %p109 = scmp.eq.s32.totalorder %s9, 1
    %p110 = por %p108, %p109
    %p111 = scmp.ne.s32.totalorder %s103, %s106
    %p112 = scmp.eq.s32.totalorder %s9, 0
    %p113 = por %p111, %p112
    %p114 = scmp.ne.s32.totalorder %s103, %s106
    %p115 = scmp.eq.s32.totalorder %s14, 1
    %p116 = por %p114, %p115
    %p117 = scmp.ne.s32.totalorder %s106, %s107
    %p118 = scmp.eq.s32.totalorder %s14, 0
    %p119 = por %p117, %p118
    %p120 = scmp.ne.s32.totalorder %s106, %s107
    %p121 = scmp.eq.s32.totalorder %s15, 1
    %p122 = por %p120, %p121
    %p124 = scmp.ne.s32.totalorder %s107, %s123
    %p125 = scmp.eq.s32.totalorder %s15, 0
    %p126 = por %p124, %p125
    %p127 = scmp.le.s32.totalorder 1, %s9
    %p128 = scmp.lt.s32.totalorder %s9, 3
    %p129 = pnand %p127, %p128
    %p130 = pneg %p129
    // Predicated region
    $region9: #{tpu_custom_call.1} parent=5 // pred_check
      _
    $region10: #{tpu_custom_call.1} parent=5 // pred_check_branch
      %132 = sbr.rel (%p129) target = $region12
    $region11: #{tpu_custom_call.1} parent=5 // pred_region
      %s133 = ssub.s32 %s9, 1
      // Predicated region
      $region13: #{tpu_custom_call.1} parent=11 // pred_check
        %p134 = pneg %p70
      $region14: #{tpu_custom_call.1} parent=11 // pred_check_branch
        %136 = sbr.rel (%p134) target = $region16
      $region15: #{tpu_custom_call.1} parent=11 // pred_region
        _
      $region16: #{tpu_custom_call.1} parent=11 // pred_fallthru
        _
      // Predicated region
      $region17: #{tpu_custom_call.1} parent=11 // pred_check
        %p137 = pneg %p91
      $region18: #{tpu_custom_call.1} parent=11 // pred_check_branch
        %139 = sbr.rel (%p137) target = $region20
      $region19: #{tpu_custom_call.1} parent=11 // pred_region
        _
      $region20: #{tpu_custom_call.1} parent=11 // pred_fallthru
        _
    $region12: #{tpu_custom_call.1} parent=5 // pred_fallthru
      _
    %p140 = scmp.lt.s32.totalorder %s9, 2
    // Predicated region
    $region21: #{tpu_custom_call.1} parent=5 // pred_check
      %p141 = pneg %p140
    $region22: #{tpu_custom_call.1} parent=5 // pred_check_branch
      %143 = sbr.rel (%p141) target = $region24
    $region23: #{tpu_custom_call.1} parent=5 // pred_region
      // Predicated region
      $region25: #{tpu_custom_call.1} parent=23 // pred_check
        %p144 = pneg %p43
      $region26: #{tpu_custom_call.1} parent=23 // pred_check_branch
        %146 = sbr.rel (%p144) target = $region28
      $region27: #{tpu_custom_call.1} parent=23 // pred_region
        %s147 = smul.u32 2, %s17
        %p148 = scmp.lt.s32.totalorder %s16, 1
        %s149 = scalar_select %p148, %s16, 1
        %p150 = scmp.lt.s32.totalorder %s147, 1
        %s151 = scalar_select %p150, %s147, 1
        %s152 = smul.addr %s149, 4
        %s153 = sadd.s32 %s151, %s152
        %s154 = smul.addr %s153, 8
        %s155 = scalar_lea.vmem %s0, %s154
        %s156 = smul.u32 2, %s17
      $region28: #{tpu_custom_call.1} parent=23 // pred_fallthru
        _
    $region24: #{tpu_custom_call.1} parent=5 // pred_fallthru
      _
    %p157 = scmp.le.s32.totalorder 1, %s9
    %p158 = scmp.lt.s32.totalorder %s9, 3
    %p159 = pnand %p157, %p158
    %p160 = pneg %p159
    // Predicated region
    $region29: #{tpu_custom_call.1} parent=5 // pred_check
      _
    $region30: #{tpu_custom_call.1} parent=5 // pred_check_branch
      %162 = sbr.rel (%p159) target = $region32
    $region31: #{tpu_custom_call.1} parent=5 // pred_region
      %s163 = ssub.s32 %s9, 1
      %s164 = smul.u32 2, %s19
      %p165 = scmp.lt.s32.totalorder %s18, 1
      %s166 = scalar_select %p165, %s18, 1
      %p167 = scmp.lt.s32.totalorder %s164, 1
      %s168 = scalar_select %p167, %s164, 1
      %s169 = smul.addr %s166, 4
      %s170 = sadd.s32 %s168, %s169
      %s171 = smul.addr %s170, 8
      %s172 = scalar_lea.vmem %s0, %s171
      %p173 = pneg %p49
      %p174 = pneg %p46
      %p175 = pneg %p70
      %p176 = pneg %p67
      %p177 = pneg %p91
      %p178 = pneg %p88
      %p179 = pneg %p119
      %p180 = pneg %p116
      %s181 = smul.u32 2, %s19
      %p182 = scmp.lt.s32.totalorder %s18, 1
      %s183 = scalar_select %p182, %s18, 1
      %p184 = scmp.lt.s32.totalorder %s181, 1
      %s185 = scalar_select %p184, %s181, 1
      %s186 = smul.addr %s183, 8
      %s187 = sadd.s32 %s185, %s186
      %s188 = smul.addr %s187, 8
      %s189 = scalar_lea.vmem %s3, %s188
      %s190 = smul.u32 2, %s19
      %p191 = scmp.lt.s32.totalorder %s18, 1
      %s192 = scalar_select %p191, %s18, 1
      %p193 = scmp.lt.s32.totalorder %s190, 1
      %s194 = scalar_select %p193, %s190, 1
      %s195 = smul.addr %s192, 4
      %s196 = sadd.s32 %s194, %s195
      %s197 = smul.addr %s196, 8
      %s198 = scalar_lea.vmem %s0, %s197
      %s199 = smul.u32 2, %s19
      %s200 = smul.u32 2, %s19
      %p201 = scmp.lt.s32.totalorder %s18, 1
      %s202 = scalar_select %p201, %s18, 1
      %p203 = scmp.lt.s32.totalorder %s200, 1
      %s204 = scalar_select %p203, %s200, 1
      %s205 = smul.addr %s202, 8
      %s206 = sadd.s32 %s204, %s205
      %s207 = smul.addr %s206, 8
      %s208 = scalar_lea.vmem %s3, %s207
      %s209 = smul.u32 2, %s19
      %v211 = vld [vmem:[%s198] sm:$0xff]
      %v212 = vld [vmem:[%s198 + $0x8] sm:$0xff]
      %v213 = vld [vmem:[%s198 + $0x10] sm:$0x1f]
      %v214 = vld [vmem:[%s198 + $0x18] sm:$0x1f]
      %v215 = vpack.c.bf16 %v213, %v211
      %v216 = vpack.c.bf16 %v214, %v212
      %v217 = vld [vmem:[%s1] sm:$0xf]
      %v218 = vld [vmem:[%s1 + $0x4] sm:$0xf]
      %v219 = vld [vmem:[%s1 + $0x8] sm:$0xf]
      %v220 = vld [vmem:[%s1 + $0xc] sm:$0x1]
      %v221 = vld [vmem:[%s2] sm:$0xff]
      %v222 = vld [vmem:[%s2 + $0x8] sm:$0xff]
      %v223 = vld [vmem:[%s2 + $0x10] sm:$0xff]
      %v224 = vld [vmem:[%s2 + $0x18] sm:$0x1]
      %226 = vset.pattern.permute.xlu0 0
      %227 = vperm.xlu0 %226, %v221
      %v228 = vpop.permute.xlu0 %227
      %231 = vset.pattern.permute.xlu0 0
      %232 = vperm.xlu0 %231, %v222
      %v233 = vpop.permute.xlu0 %232
      %236 = vset.pattern.permute.xlu0 0
      %237 = vperm.xlu0 %236, %v223
      %v238 = vpop.permute.xlu0 %237
      %241 = vset.pattern.permute.xlu0 0
      %242 = vperm.xlu0 %241, %v224
      %v243 = vpop.permute.xlu0 %242
      %v249 = vunpack.c.l.b16 %v217
      %v250 = vunpack.c.l.b16 %v218
      %v251 = vunpack.c.l.b16 %v219
      %v252 = vunpack.c.l.b16 %v220
      %v253 = vpack.c.b16 %v250, %v249
      %v254 = vpack.c.b16 %v252, %v251
      %vm255 = vcmask 105472
      %v257 = vsel %vm255, %v253, 0
      %v260 = vsel %vm255, %v254, 0
      %vm262 = vcmask 1045504
      %vm263 = vcmask 1046528
      %v264 = vsel %vm262, 4294967295, 65535
      %v265 = vsel %vm263, %v264, 0
      %v267 = vand.u32 %v215, %v265
      %v270 = vand.u32 %v216, %v265
      %272 = vmatprep.subr.bf16.mxu0 0
      %273 = vmatpush1.bf16.msra.mxu0 0
      %274 = vmatprep.subr.bf16.mxu0 0
      %275 = vmatpush1.bf16.msra.mxu0 0
      %276 = vmatprep.subr.bf16.mxu0 0
      %277 = vmatpush1.bf16.msra.mxu0 0
      %278 = vmatprep.subr.bf16.mxu0 0
      %279 = vmatpush1.bf16.msra.mxu0 0
      %280 = vmatprep.subr.bf16.mxu0 0
      %281 = vmatpush1.bf16.msra.mxu0 0
      %282 = vmatprep.subr.bf16.mxu0 0
      %283 = vmatpush1.bf16.msra.mxu0 0
      %284 = vmatprep.subr.bf16.mxu0 0
      %285 = vmatpush1.bf16.msra.mxu0 0
      %286 = vmatprep.subr.bf16.mxu0 %v270
      %287 = vmatpush1.bf16.msra.mxu0 %v267
      %288 = vmatprep.subr.bf16.mxu0 0
      %289 = vmatpush2.bf16.msra.mxu0 0
      %290 = vmatprep.subr.bf16.mxu0 0
      %291 = vmatpush2.bf16.msra.mxu0 0
      %292 = vmatprep.subr.bf16.mxu0 0
      %293 = vmatpush2.bf16.msra.mxu0 0
      %294 = vmatprep.subr.bf16.mxu0 0
      %295 = vmatpush2.bf16.msra.mxu0 0
      %296 = vmatprep.subr.bf16.mxu0 0
      %297 = vmatpush2.bf16.msra.mxu0 0
      %298 = vmatprep.subr.bf16.mxu0 0
      %299 = vmatpush2.bf16.msra.mxu0 0
      %300 = vmatprep.subr.bf16.mxu0 0
      %301 = vmatpush2.bf16.msra.mxu0 0
      %302 = vmatprep.subr.bf16.mxu0 0
      %303 = vmatpush2.bf16.msra.mxu0 0
      %304 = vmatprep.mubr.bf16.mxu0 0
      %305 = vmatmul.mubr.bf16.gmra.mxu0 %v257
      %v306 = vpop.f32.mrf.mxu0
      %v307 = vadd.f32 %v228, %v306
      %v308 = vpop.f32.mrf.mxu0
      %v309 = vadd.f32 %v228, %v308
      %v310 = vpop.f32.mrf.mxu0
      %v311 = vadd.f32 %v233, %v310
      %v312 = vpop.f32.mrf.mxu0
      %v313 = vadd.f32 %v233, %v312
      %314 = vmatprep.mubr.bf16.mxu0 0
      %315 = vmatmul.mubr.bf16.gmra.mxu0 %v260
      %v316 = vpop.f32.mrf.mxu0
      %v317 = vadd.f32 %v238, %v316
      %v318 = vpop.f32.mrf.mxu0
      %v319 = vadd.f32 %v238, %v318
      %v320 = vpop.f32.mrf.mxu0
      %v321 = vadd.f32 %v243, %v320
      %v322 = vpop.f32.mrf.mxu0
      %v323 = vadd.f32 %v243, %v322
      %324 = vdwg.mxu0
      %v325 = vsub.f32 0.0, %v307
      %v326 = vsub.f32 0.0, %v309
      %v327 = vsub.f32 0.0, %v311
      %v328 = vsub.f32 0.0, %v313
      %v329 = vsub.f32 0.0, %v317
      %v330 = vsub.f32 0.0, %v319
      %v331 = vsub.f32 0.0, %v321
      %v332 = vsub.f32 0.0, %v323
      %v333 = vmul.f32 %v325, 1.442695
      %v334 = vpow.pop %v333
      %v335 = vmul.f32 %v326, 1.442695
      %v336 = vpow.pop %v335
      %v337 = vmul.f32 %v327, 1.442695
      %v338 = vpow.pop %v337
      %v339 = vmul.f32 %v328, 1.442695
      %v340 = vpow.pop %v339
      %v341 = vmul.f32 %v329, 1.442695
      %v342 = vpow.pop %v341
      %v343 = vmul.f32 %v330, 1.442695
      %v344 = vpow.pop %v343
      %v345 = vmul.f32 %v331, 1.442695
      %v346 = vpow.pop %v345
      %v347 = vmul.f32 %v332, 1.442695
      %v348 = vpow.pop %v347
      %v349 = vadd.f32 %v334, 1.0
      %v350 = vadd.f32 %v336, 1.0
      %v351 = vadd.f32 %v338, 1.0
      %v352 = vadd.f32 %v340, 1.0
      %v353 = vadd.f32 %v342, 1.0
      %v354 = vadd.f32 %v344, 1.0
      %v355 = vadd.f32 %v346, 1.0
      %v356 = vadd.f32 %v348, 1.0
      %v357 = vrcp.pop %v349
      %v358 = vrcp.pop %v350
      %v359 = vrcp.pop %v351
      %v360 = vrcp.pop %v352
      %v361 = vrcp.pop %v353
      %v362 = vrcp.pop %v354
      %v363 = vrcp.pop %v355
      %v364 = vrcp.pop %v356
      %v365 = vmul.f32 %v307, %v357
      %v366 = vmul.f32 %v309, %v358
      %v367 = vmul.f32 %v311, %v359
      %v368 = vmul.f32 %v313, %v360
      %v369 = vmul.f32 %v317, %v361
      %v370 = vmul.f32 %v319, %v362
      %v371 = vmul.f32 %v321, %v363
      %v372 = vmul.f32 %v323, %v364
      %373 = vst [vmem:[%s208] sm:$0xff] %v365
      %374 = vst [vmem:[%s208 + $0x8] sm:$0xff] %v366
      %375 = vst [vmem:[%s208 + $0x10] sm:$0xff] %v367
      %376 = vst [vmem:[%s208 + $0x18] sm:$0xff] %v368
      %377 = vst [vmem:[%s208 + $0x20] sm:$0xff] %v369
      %378 = vst [vmem:[%s208 + $0x28] sm:$0xff] %v370
      %379 = vst [vmem:[%s208 + $0x30] sm:$0x1] %v371
      %380 = vst [vmem:[%s208 + $0x38] sm:$0x1] %v372
      %s381 = smul.u32 2, %s19
      %p382 = scmp.lt.s32.totalorder %s18, 1
      %s383 = scalar_select %p382, %s18, 1
      %p384 = scmp.lt.s32.totalorder %s381, 1
      %s385 = scalar_select %p384, %s381, 1
      %s386 = smul.addr %s383, 8
      %s387 = sadd.s32 %s385, %s386
      %s388 = smul.addr %s387, 8
      %s389 = scalar_lea.vmem %s3, %s388
      // Predicated region
      $region33: #{tpu_custom_call.1} parent=31 // pred_check
        %p390 = pneg %p116
      $region34: #{tpu_custom_call.1} parent=31 // pred_check_branch
        %392 = sbr.rel (%p390) target = $region36
      $region35: #{tpu_custom_call.1} parent=31 // pred_region
        %s393 = smul.u32 2, %s19
      $region36: #{tpu_custom_call.1} parent=31 // pred_fallthru
        _
    $region32: #{tpu_custom_call.1} parent=5 // pred_fallthru
      _
    %p394 = scmp.le.s32.totalorder 2, %s9
    // Predicated region
    $region37: #{tpu_custom_call.1} parent=5 // pred_check
      %p395 = pneg %p394
    $region38: #{tpu_custom_call.1} parent=5 // pred_check_branch
      %397 = sbr.rel (%p395) target = $region40
    $region39: #{tpu_custom_call.1} parent=5 // pred_region
      %s398 = ssub.s32 %s9, 2
      // Predicated region
      $region41: #{tpu_custom_call.1} parent=39 // pred_check
        %p399 = pneg %p122
      $region42: #{tpu_custom_call.1} parent=39 // pred_check_branch
        %401 = sbr.rel (%p399) target = $region44
      $region43: #{tpu_custom_call.1} parent=39 // pred_region
        %s402 = smul.u32 2, %s21
        %p403 = scmp.lt.s32.totalorder %s20, 1
        %s404 = scalar_select %p403, %s20, 1
        %p405 = scmp.lt.s32.totalorder %s402, 1
        %s406 = scalar_select %p405, %s402, 1
        %s407 = smul.addr %s404, 8
        %s408 = sadd.s32 %s406, %s407
        %s409 = smul.addr %s408, 8
        %s410 = scalar_lea.vmem %s3, %s409
      $region44: #{tpu_custom_call.1} parent=39 // pred_fallthru
        _
    $region40: #{tpu_custom_call.1} parent=5 // pred_fallthru
      _
  $region6: #{tpu_custom_call.1} parent=0 // loop_footer
    %s13 = sadd.s32 1, %s9
  $region7: #{tpu_custom_call.1} parent=0 // loop_footer_branch
    %8 = sbr.rel target = $region3
  $region8: #{tpu_custom_call.1} parent=0 // loop_exit
    _

</llo_original>
